<compile_context>
chip_gen: v5e
topology: v5e:2x2
jax: 0.10.0
libtpu: 0.0.40
codegen_flags: <defaults>
</compile_context>

<pallas_src>
import functools

import jax
import jax.numpy as jnp
from jax.experimental import pallas as pl
from jax.experimental.pallas import tpu as pltpu


# ----------------------------------------------------------------------------- kernel
def _conv1x1_bn_kernel(x_ref, w_ref, scale_ref, shift_ref, o_ref, *, compute_dtype):
    # x_ref:     (Cin, LT)   activation tile in its producer dtype (cast here)
    # w_ref:     (Cb,  Cin)  bf16 1x1-conv weight block (BN scale NOT folded)
    # scale_ref: (Cb,  1)    f32 BN scale  = gamma * rsqrt(var + eps)
    # shift_ref: (Cb,  1)    f32 BN shift  = beta - mean * scale
    # o_ref:     (Cb,  LT)   output tile in compute_dtype (bf16)
    x = x_ref[...].astype(compute_dtype)                      # VPU cast, no extra HBM pass
    acc = jnp.dot(w_ref[...], x, preferred_element_type=jnp.float32)   # MXU, f32 acc
    o_ref[...] = (acc * scale_ref[...] + shift_ref[...]).astype(o_ref.dtype)


# ----------------------------------------------------------------------------- pallas_call wrapper
def conv1x1_bn_pallas(x3, w, scale, shift, *, cout_block, p_tile, compute_dtype):
    """Fused 1x1-conv + BatchNorm(eval) over a pixels-last (N, Cin, P) layout.

    x3:    (N, Cin, P)   activations (any float dtype; cast in-kernel)
    w:     (Cout, Cin)   weight (compute_dtype)
    scale: (Cout, 1)     f32 BN scale
    shift: (Cout, 1)     f32 BN shift
    returns (N, Cout, P) in compute_dtype
    """
    N, Cin, P = x3.shape
    Cout = w.shape[0]
    assert P % p_tile == 0 and Cout % cout_block == 0

    # Cout innermost: the (big) x tile's block index is unchanged across Cout
    # blocks, so Pallas fetches it once; only the small weight block re-DMAs.
    grid = (N, P // p_tile, Cout // cout_block)

    return pl.pallas_call(
        functools.partial(_conv1x1_bn_kernel, compute_dtype=compute_dtype),
        out_shape=jax.ShapeDtypeStruct((N, Cout, P), compute_dtype),
        grid_spec=pltpu.PrefetchScalarGridSpec(
            num_scalar_prefetch=0,
            grid=grid,
            in_specs=[
                # batch dim squeezed; pixels on the 128-wide lane axis
                pl.BlockSpec((None, Cin, p_tile), lambda n, j, o: (n, 0, j)),
                pl.BlockSpec((cout_block, Cin), lambda n, j, o: (o, 0)),
                pl.BlockSpec((cout_block, 1), lambda n, j, o: (o, 0)),
                pl.BlockSpec((cout_block, 1), lambda n, j, o: (o, 0)),
            ],
            out_specs=pl.BlockSpec((None, cout_block, p_tile),
                                   lambda n, j, o: (n, o, j)),
        ),
        compiler_params=pltpu.CompilerParams(
            dimension_semantics=("parallel", "parallel", "parallel"),
            vmem_limit_bytes=32 * 1024 * 1024,   # safe scoped limit on v5e/v6e/v7x
        ),
    )(x3, w, scale, shift)


# ----------------------------------------------------------------------------- tiling policy
_VMEM_BUDGET = 20 * 1024 * 1024   # pipelined-buffer budget, under the 32 MiB scoped limit
_LANE_TILE_CAP = 1024             # fallback tile cap: safe on v5e, good on v6e/v7x


def _choose_tiling(Cin, Cout, P, x_itemsize, out_itemsize):
    # Split Cout into 128-row blocks when it divides cleanly (production Cout=256
    # -> 2 parallel blocks that exactly fill the MXU and feed both v7x cores).
    cout_block = 128 if Cout % 128 == 0 else Cout

    # Bytes per pixel-column across double-buffered input + output blocks.
    col_bytes = 2 * (Cin * x_itemsize + cout_block * out_itemsize)
    w_bytes = 2 * (Cout * Cin * 2) + 4 * Cout * 4          # resident weight + scale/shift
    budget = max(_VMEM_BUDGET - w_bytes, 1 << 20)

    if P * col_bytes <= budget:
        # Full-extent spatial block: legal for any P (block dim == full array dim),
        # so no padding copy and no output slice copy are needed.
        return cout_block, P, P

    # Rare fallback for very large feature maps: tile on a multiple of 128 and pad.
    lane_tile = min(_LANE_TILE_CAP, max(128, (budget // col_bytes) // 128 * 128))
    p_pad = pl.cdiv(P, lane_tile) * lane_tile
    return cout_block, lane_tile, p_pad


# ----------------------------------------------------------------------------- module forward
def res_down_s_forward(x_nchw, conv_w_oihw, bn_gamma, bn_beta, bn_mean, bn_var,
                       eps=1e-5, compute_dtype=jnp.bfloat16):
    """Exact ResDownS.forward semantics (BatchNorm in eval mode), NCHW in/out."""
    N, Cin, H, W = x_nchw.shape
    Cout = conv_w_oihw.shape[0]
    # The crop-before-conv hoist is only valid for a pointwise conv.
    assert conv_w_oihw.shape[2:] == (1, 1), "crop hoist requires kernel_size=1"

    # 1x1 conv preserves spatial size, so cropping the input is identical to
    # cropping the output (and ~4.6x cheaper when the crop fires).
    if W < 20:
        x_nchw = x_nchw[:, :, 4:-4, 4:-4]
    Hc, Wc = x_nchw.shape[2], x_nchw.shape[3]
    P = Hc * Wc

    # BN(eval) as a per-channel f32 affine epilogue (scale NOT folded into the
    # bf16 weight -> only rounding left is the bf16 cast of w and x).
    scale = (bn_gamma.astype(jnp.float32)
             * jax.lax.rsqrt(bn_var.astype(jnp.float32) + eps))
    shift = bn_beta.astype(jnp.float32) - bn_mean.astype(jnp.float32) * scale
    scale = scale.reshape(Cout, 1)
    shift = shift.reshape(Cout, 1)
    w_mat = conv_w_oihw.reshape(Cout, Cin).astype(compute_dtype)

    # Pixels-last, transpose-free view.  Free (contiguous) when no crop fired;
    # a tiny copy for the cropped template branch.  No cast / no pad here: the
    # kernel reads x in its producer dtype and casts in VMEM.
    x3 = x_nchw.reshape(N, Cin, P)

    cout_block, p_tile, p_pad = _choose_tiling(
        Cin, Cout, P, x3.dtype.itemsize, jnp.dtype(compute_dtype).itemsize)

    if p_pad != P:
        # Only for feature maps too large for a full-extent spatial block.
        x3 = jnp.pad(x3, ((0, 0), (0, 0), (0, p_pad - P)))

    y3 = conv1x1_bn_pallas(x3, w_mat, scale, shift,
                           cout_block=cout_block, p_tile=p_tile,
                           compute_dtype=compute_dtype)

    if p_pad != P:
        y3 = y3[:, :, :P]
    # Contiguous reshape back to NCHW (no transpose, no copy).
    return y3.reshape(N, Cout, Hc, Wc)


# ----------------------------------------------------------------------------- reference + test
def _reference(x_nchw, conv_w_oihw, bn_gamma, bn_beta, bn_mean, bn_var, eps=1e-5):
    Cout, Cin = conv_w_oihw.shape[:2]
    w_mat = conv_w_oihw.reshape(Cout, Cin)
    y = jnp.einsum("nchw,oc->nohw", x_nchw, w_mat)
    scale = (bn_gamma / jnp.sqrt(bn_var + eps)).reshape(1, Cout, 1, 1)
    shift = (bn_beta - bn_mean * bn_gamma / jnp.sqrt(bn_var + eps)).reshape(1, Cout, 1, 1)
    y = y * scale + shift
    if y.shape[3] < 20:
        y = y[:, :, 4:-4, 4:-4]
    return y


if __name__ == "__main__":
    key = jax.random.PRNGKey(0)
    k_x, k_w, k_g, k_b, k_m, k_v = jax.random.split(key, 6)

    N, Cin, H, W = 2, 8, 16, 16       # inplane=8
    Cout = 4                          # outplane=4

    x = jax.random.normal(k_x, (N, Cin, H, W), dtype=jnp.float32)
    conv_w = jax.random.normal(k_w, (Cout, Cin, 1, 1), dtype=jnp.float32) * 0.1
    bn_gamma = 1.0 + 0.1 * jax.random.normal(k_g, (Cout,), dtype=jnp.float32)
    bn_beta = 0.1 * jax.random.normal(k_b, (Cout,), dtype=jnp.float32)
    bn_mean = 0.1 * jax.random.normal(k_m, (Cout,), dtype=jnp.float32)
    bn_var = jnp.abs(jax.random.normal(k_v, (Cout,), dtype=jnp.float32)) + 0.5

    out = res_down_s_forward(x, conv_w, bn_gamma, bn_beta, bn_mean, bn_var)
    out = jax.block_until_ready(out)

    ref = _reference(x, conv_w, bn_gamma, bn_beta, bn_mean, bn_var)
    assert out.shape == (N, Cout, H - 8, W - 8), out.shape
    # bf16 activations/weights/output -> looser tolerance than pure f32.
    err = float(jnp.max(jnp.abs(out.astype(jnp.float32) - ref)))
    assert jnp.allclose(out.astype(jnp.float32), ref, atol=3e-2, rtol=3e-2), err

    print("KERNEL_OK")
</pallas_src>

<mosaic_0001>
module attributes {stable_mosaic.version = 11 : i64} {
  func.func @_conv1x1_bn_kernel(%arg0: i32, %arg1: i32, %arg2: i32, %arg3: memref<1x8x64xf32, #tpu.memory_space<vmem>>, %arg4: memref<4x8xbf16, #tpu.memory_space<vmem>>, %arg5: memref<4x1xf32, #tpu.memory_space<vmem>>, %arg6: memref<4x1xf32, #tpu.memory_space<vmem>>, %arg7: memref<1x4x64xbf16, #tpu.memory_space<vmem>>) attributes {dimension_semantics = [#tpu.dimension_semantics<parallel>, #tpu.dimension_semantics<parallel>, #tpu.dimension_semantics<parallel>], iteration_bounds = array<i64: 2, 1, 1>, scalar_prefetch = 0 : i64, scratch_operands = 0 : i64, tpu.core_type = #tpu.core_type<tc>, window_params = [{transform_indices = @transform_0, window_bounds = array<i64: 1, 8, 64>}, {transform_indices = @transform_1, window_bounds = array<i64: 4, 8>}, {transform_indices = @transform_2, window_bounds = array<i64: 4, 1>}, {transform_indices = @transform_3, window_bounds = array<i64: 4, 1>}, {transform_indices = @transform_4, window_bounds = array<i64: 1, 4, 64>}]} {
    %c0 = arith.constant 0 : index
    %c0_0 = arith.constant 0 : index
    %c0_1 = arith.constant 0 : index
    %0 = vector.load %arg3[%c0, %c0_0, %c0_1] : memref<1x8x64xf32, #tpu.memory_space<vmem>>, vector<1x8x64xf32>
    %1 = vector.shape_cast %0 : vector<1x8x64xf32> to vector<8x64xf32>
    %2 = arith.truncf %1 : vector<8x64xf32> to vector<8x64xbf16>
    %c0_2 = arith.constant 0 : index
    %c0_3 = arith.constant 0 : index
    %3 = vector.load %arg4[%c0_2, %c0_3] : memref<4x8xbf16, #tpu.memory_space<vmem>>, vector<4x8xbf16>
    %cst = arith.constant dense<0.000000e+00> : vector<4x64xf32>
    %4 = tpu.matmul %3, %2, %cst {dimension_numbers = #tpu.dot_dimension_numbers<[1], [0], [0], [1], [0, 0, 1, 1], [], []>} : vector<4x8xbf16>, vector<8x64xbf16>, vector<4x64xf32> -> vector<4x64xf32>
    %c0_4 = arith.constant 0 : index
    %c0_5 = arith.constant 0 : index
    %5 = vector.load %arg5[%c0_4, %c0_5] : memref<4x1xf32, #tpu.memory_space<vmem>>, vector<4x1xf32>
    %6 = vector.broadcast %5 : vector<4x1xf32> to vector<4x64xf32>
    %7 = arith.mulf %4, %6 : vector<4x64xf32>
    %c0_6 = arith.constant 0 : index
    %c0_7 = arith.constant 0 : index
    %8 = vector.load %arg6[%c0_6, %c0_7] : memref<4x1xf32, #tpu.memory_space<vmem>>, vector<4x1xf32>
    %9 = vector.broadcast %8 : vector<4x1xf32> to vector<4x64xf32>
    %10 = arith.addf %7, %9 : vector<4x64xf32>
    %11 = arith.truncf %10 : vector<4x64xf32> to vector<4x64xbf16>
    %c0_8 = arith.constant 0 : index
    %c0_9 = arith.constant 0 : index
    %c0_10 = arith.constant 0 : index
    %12 = vector.load %arg7[%c0_8, %c0_9, %c0_10] : memref<1x4x64xbf16, #tpu.memory_space<vmem>>, vector<1x4x64xbf16>
    %13 = vector.shape_cast %12 : vector<1x4x64xbf16> to vector<4x64xbf16>
    %14 = vector.shape_cast %11 : vector<4x64xbf16> to vector<1x4x64xbf16>
    tpu.vector_store %arg7[%c0_8, %c0_9, %c0_10], %14 {strides = array<i32>} : memref<1x4x64xbf16, #tpu.memory_space<vmem>>, vector<1x4x64xbf16>,
    return
  }
  func.func @transform_0(%arg0: i32, %arg1: i32, %arg2: i32) -> (i32, i32, i32) {
    %c0_i32 = arith.constant 0 : i32
    %c0_i32_0 = arith.constant 0 : i32
    return %arg0, %c0_i32, %arg1 : i32, i32, i32
  }
  func.func @transform_1(%arg0: i32, %arg1: i32, %arg2: i32) -> (i32, i32) {
    %c0_i32 = arith.constant 0 : i32
    %c0_i32_0 = arith.constant 0 : i32
    return %arg2, %c0_i32 : i32, i32
  }
  func.func @transform_2(%arg0: i32, %arg1: i32, %arg2: i32) -> (i32, i32) {
    %c0_i32 = arith.constant 0 : i32
    %c0_i32_0 = arith.constant 0 : i32
    return %arg2, %c0_i32 : i32, i32
  }
  func.func @transform_3(%arg0: i32, %arg1: i32, %arg2: i32) -> (i32, i32) {
    %c0_i32 = arith.constant 0 : i32
    %c0_i32_0 = arith.constant 0 : i32
    return %arg2, %c0_i32 : i32, i32
  }
  func.func @transform_4(%arg0: i32, %arg1: i32, %arg2: i32) -> (i32, i32, i32) {
    %c0_i32 = arith.constant 0 : i32
    return %arg0, %arg2, %arg1 : i32, i32, i32
  }
}

</mosaic_0001>

<llo_original>
// kernel: tpu_custom_call.1
$region0: #{tpu_custom_call.1}
  #allocation0 [shape = 'u32[]', space=smem, size = 0x4, offset = 0x4, fixed_abs, tag = 'smem constant byte address 0x4 - core index']
  #allocation1 [shape = 'u32[72,128]{1,0:T(1,128)}', space=vmem, size = 0x9000, scoped, tag = 'internal scratch']
  %s0 = inlined_call_operand.hbm [shape: f32[2,8,64], index: 0, kind: input, shape index: {}]
  %s1 = inlined_call_operand.vmem [shape: bf16[4,8], index: 1, kind: input, shape index: {}]
  %s2 = inlined_call_operand.vmem [shape: f32[4,1], index: 2, kind: input, shape index: {}]
  %s3 = inlined_call_operand.vmem [shape: f32[4,1], index: 3, kind: input, shape index: {}]
  %s4 = inlined_call_operand.hbm [shape: bf16[2,4,64], index: 4, kind: output, shape index: {}]
  %s5 = sld [smem:[#allocation0]]
  $region53: #{tpu_custom_call.1} parent=0
    _
  %s7 = ssub.s32 1, %s5
  %s8 = scalar_select 0, %s7, %s5
  $region1: #{tpu_custom_call.1} parent=0
    #allocation2 [shape = 'u8[8192]{0}', space=vmem, size = 0x2000, scoped, tag = 'input window, operand 0']
    #allocation3 [shape = 's32[2]{0}', space=sflag, size = 0x8, scoped, tag = 'scoped memory for tpu_custom_call.1']
    #allocation4 [shape = 's32[2]{0}', space=sflag, size = 0x8, scoped, tag = 'scoped memory for tpu_custom_call.1']
    #allocation5 [shape = 'u8[2048]{0}', space=vmem, size = 0x800, scoped, tag = 'output window, operand 0']
    %9 = vsyncpa [#allocation3], 0
    %s10 = scalar_lea.sflag [#allocation3], 1
    %11 = vsyncpa %s10, 0
    %12 = vsyncpa [#allocation4], 0
    %s13 = scalar_lea.sflag [#allocation4], 1
    %14 = vsyncpa %s13, 0
    loop: start=0, step=1, limit=4
    $region2: #{tpu_custom_call.1} parent=1 // loop_pre_header
      _
    $region3: #{tpu_custom_call.1} parent=1 // loop_header
      %s16 = sphi 0, %s20
      %p17 = scmp.ge.s32.totalorder %s16, 4
      %s23 = sphi 0, %s42
      %s24 = sphi 0, %s38
      %s25 = sphi 0, %s34
      %s26 = sphi 0, %s23
      %s27 = sphi 0, %s24
      %s28 = sphi 0, %s25
      %s29 = sphi 0, %s26
      %s30 = sphi 0, %s27
      %s31 = sphi 0, %s28
      %s47 = sphi 0, %s49
      %s50 = sphi 0, %s47
      %s51 = sphi 0, %s50
      %s67 = sphi 0, %s51
      %s73 = sphi 0, %s75
      %s76 = sphi 0, %s73
      %s77 = sphi 0, %s76
      %s93 = sphi 0, %s77
      %s99 = sphi 0, %s101
      %s102 = sphi 0, %s99
      %s103 = sphi 0, %s102
      %s119 = sphi 0, %s103
      %s125 = sphi 0, %s127
      %s128 = sphi 0, %s125
      %s129 = sphi 0, %s128
      %s145 = sphi 0, %s129
      %s155 = sphi 0, %s157
      %s158 = sphi 0, %s155
      %s159 = sphi 0, %s158
      %s175 = sphi 0, %s159
    $region4: #{tpu_custom_call.1} parent=1 // loop_header_branch
      %19 = sbr.rel (%p17) target = $region8
    $region5: #{tpu_custom_call.1} parent=1 // loop_body
      %s21 = ssub.s32 %s16, 1
      %s22 = ssub.s32 %s16, 2
      %s32 = sadd.s32 1, %s25
      %p33 = scmp.ge.s32.totalorder %s32, 1
      %s34 = scalar_select %p33, 0, %s32
      %s35 = sadd.s32 1, %s24
      %s36 = scalar_select %p33, %s35, %s24
      %p37 = scmp.ge.s32.totalorder %s36, 1
      %s38 = scalar_select %p37, 0, %s36
      %s39 = sadd.s32 1, %s23
      %s40 = scalar_select %p37, %s39, %s23
      %p41 = scmp.ge.s32.totalorder %s40, 2
      %s42 = scalar_select %p41, 0, %s40
      %s43 = ssub.s32 %s23, %s42
      %s44 = ssub.s32 %s24, %s38
      %s45 = sor.u32 %s43, %s44
      %p46 = scmp.eq.s32.totalorder %s45, 0
      %s48 = sadd.s32 %s47, 1
      %s49 = scalar_select %p46, %s47, %s48
      %p52 = pneg %p46
      %p53 = scmp.eq.s32.totalorder %s16, 1
      %p54 = por %p52, %p53
      %p55 = scmp.ne.s32.totalorder %s47, %s50
      %p56 = scmp.eq.s32.totalorder %s16, 0
      %p57 = por %p55, %p56
      %p58 = scmp.ne.s32.totalorder %s47, %s50
      %p59 = scmp.eq.s32.totalorder %s21, 1
      %p60 = por %p58, %p59
      %p61 = scmp.ne.s32.totalorder %s50, %s51
      %p62 = scmp.eq.s32.totalorder %s21, 0
      %p63 = por %p61, %p62
      %p64 = scmp.ne.s32.totalorder %s50, %s51
      %p65 = scmp.eq.s32.totalorder %s22, 1
      %p66 = por %p64, %p65
      %p68 = scmp.ne.s32.totalorder %s51, %s67
      %p69 = scmp.eq.s32.totalorder %s22, 0
      %p70 = por %p68, %p69
      %s71 = ssub.s32 %s25, %s34
      %p72 = scmp.eq.s32.totalorder %s71, 0
      %s74 = sadd.s32 %s73, 1
      %s75 = scalar_select %p72, %s73, %s74
      %p78 = pneg %p72
      %p79 = scmp.eq.s32.totalorder %s16, 1
      %p80 = por %p78, %p79
      %p81 = scmp.ne.s32.totalorder %s73, %s76
      %p82 = scmp.eq.s32.totalorder %s16, 0
      %p83 = por %p81, %p82
      %p84 = scmp.ne.s32.totalorder %s73, %s76
      %p85 = scmp.eq.s32.totalorder %s21, 1
      %p86 = por %p84, %p85
      %p87 = scmp.ne.s32.totalorder %s76, %s77
      %p88 = scmp.eq.s32.totalorder %s21, 0
      %p89 = por %p87, %p88
      %p90 = scmp.ne.s32.totalorder %s76, %s77
      %p91 = scmp.eq.s32.totalorder %s22, 1
      %p92 = por %p90, %p91
      %p94 = scmp.ne.s32.totalorder %s77, %s93
      %p95 = scmp.eq.s32.totalorder %s22, 0
      %p96 = por %p94, %p95
      %s97 = ssub.s32 %s25, %s34
      %p98 = scmp.eq.s32.totalorder %s97, 0
      %s100 = sadd.s32 %s99, 1
      %s101 = scalar_select %p98, %s99, %s100
      %p104 = pneg %p98
      %p105 = scmp.eq.s32.totalorder %s16, 1
      %p106 = por %p104, %p105
      %p107 = scmp.ne.s32.totalorder %s99, %s102
      %p108 = scmp.eq.s32.totalorder %s16, 0
      %p109 = por %p107, %p108
      %p110 = scmp.ne.s32.totalorder %s99, %s102
      %p111 = scmp.eq.s32.totalorder %s21, 1
      %p112 = por %p110, %p111
      %p113 = scmp.ne.s32.totalorder %s102, %s103
      %p114 = scmp.eq.s32.totalorder %s21, 0
      %p115 = por %p113, %p114
      %p116 = scmp.ne.s32.totalorder %s102, %s103
      %p117 = scmp.eq.s32.totalorder %s22, 1
      %p118 = por %p116, %p117
      %p120 = scmp.ne.s32.totalorder %s103, %s119
      %p121 = scmp.eq.s32.totalorder %s22, 0
      %p122 = por %p120, %p121
      %s123 = ssub.s32 %s25, %s34
      %p124 = scmp.eq.s32.totalorder %s123, 0
      %s126 = sadd.s32 %s125, 1
      %s127 = scalar_select %p124, %s125, %s126
      %p130 = pneg %p124
      %p131 = scmp.eq.s32.totalorder %s16, 1
      %p132 = por %p130, %p131
      %p133 = scmp.ne.s32.totalorder %s125, %s128
      %p134 = scmp.eq.s32.totalorder %s16, 0
      %p135 = por %p133, %p134
      %p136 = scmp.ne.s32.totalorder %s125, %s128
      %p137 = scmp.eq.s32.totalorder %s21, 1
      %p138 = por %p136, %p137
      %p139 = scmp.ne.s32.totalorder %s128, %s129
      %p140 = scmp.eq.s32.totalorder %s21, 0
      %p141 = por %p139, %p140
      %p142 = scmp.ne.s32.totalorder %s128, %s129
      %p143 = scmp.eq.s32.totalorder %s22, 1
      %p144 = por %p142, %p143
      %p146 = scmp.ne.s32.totalorder %s129, %s145
      %p147 = scmp.eq.s32.totalorder %s22, 0
      %p148 = por %p146, %p147
      %s149 = ssub.s32 %s23, %s42
      %s150 = ssub.s32 %s25, %s34
      %s151 = sor.u32 %s149, %s150
      %s152 = ssub.s32 %s24, %s38
      %s153 = sor.u32 %s151, %s152
      %p154 = scmp.eq.s32.totalorder %s153, 0
      %s156 = sadd.s32 %s155, 1
      %s157 = scalar_select %p154, %s155, %s156
      %p160 = pneg %p154
      %p161 = scmp.eq.s32.totalorder %s16, 1
      %p162 = por %p160, %p161
      %p163 = scmp.ne.s32.totalorder %s155, %s158
      %p164 = scmp.eq.s32.totalorder %s16, 0
      %p165 = por %p163, %p164
      %p166 = scmp.ne.s32.totalorder %s155, %s158
      %p167 = scmp.eq.s32.totalorder %s21, 1
      %p168 = por %p166, %p167
      %p169 = scmp.ne.s32.totalorder %s158, %s159
      %p170 = scmp.eq.s32.totalorder %s21, 0
      %p171 = por %p169, %p170
      %p172 = scmp.ne.s32.totalorder %s158, %s159
      %p173 = scmp.eq.s32.totalorder %s22, 1
      %p174 = por %p172, %p173
      %p176 = scmp.ne.s32.totalorder %s159, %s175
      %p177 = scmp.eq.s32.totalorder %s22, 0
      %p178 = por %p176, %p177
      %p179 = scmp.le.s32.totalorder 1, %s16
      %p180 = scmp.lt.s32.totalorder %s16, 3
      %p181 = pnand %p179, %p180
      %p182 = pneg %p181
      // Predicated region
      $region9: #{tpu_custom_call.1} parent=5 // pred_check
        _
      $region10: #{tpu_custom_call.1} parent=5 // pred_check_branch
        %184 = sbr.rel (%p181) target = $region12
      $region11: #{tpu_custom_call.1} parent=5 // pred_region
        %s185 = ssub.s32 %s16, 1
        // Predicated region
        $region13: #{tpu_custom_call.1} parent=11 // pred_check
          %p186 = pneg %p89
        $region14: #{tpu_custom_call.1} parent=11 // pred_check_branch
          %188 = sbr.rel (%p186) target = $region16
        $region15: #{tpu_custom_call.1} parent=11 // pred_region
          %p189 = scmp.lt.s32.totalorder %s28, 0
          %s190 = scalar_select %p189, %s28, 0
          %s191 = smul.addr %s190, 2
          %s192 = scalar_lea.vmem %s1, %s191
        $region16: #{tpu_custom_call.1} parent=11 // pred_fallthru
          _
        // Predicated region
        $region17: #{tpu_custom_call.1} parent=11 // pred_check
          %p193 = pneg %p115
        $region18: #{tpu_custom_call.1} parent=11 // pred_check_branch
          %195 = sbr.rel (%p193) target = $region20
        $region19: #{tpu_custom_call.1} parent=11 // pred_region
          %p196 = scmp.lt.s32.totalorder %s28, 0
          %s197 = scalar_select %p196, %s28, 0
          %s198 = smul.addr %s197, 4
          %s199 = scalar_lea.vmem %s2, %s198
        $region20: #{tpu_custom_call.1} parent=11 // pred_fallthru
          _
        // Predicated region
        $region21: #{tpu_custom_call.1} parent=11 // pred_check
          %p200 = pneg %p141
        $region22: #{tpu_custom_call.1} parent=11 // pred_check_branch
          %202 = sbr.rel (%p200) target = $region24
        $region23: #{tpu_custom_call.1} parent=11 // pred_region
          %p203 = scmp.lt.s32.totalorder %s28, 0
          %s204 = scalar_select %p203, %s28, 0
          %s205 = smul.addr %s204, 4
          %s206 = scalar_lea.vmem %s3, %s205
        $region24: #{tpu_custom_call.1} parent=11 // pred_fallthru
          _
      $region12: #{tpu_custom_call.1} parent=5 // pred_fallthru
        _
      %p207 = scmp.lt.s32.totalorder %s16, 2
      // Predicated region
      $region25: #{tpu_custom_call.1} parent=5 // pred_check
        %p208 = pneg %p207
      $region26: #{tpu_custom_call.1} parent=5 // pred_check_branch
        %210 = sbr.rel (%p208) target = $region28
      $region27: #{tpu_custom_call.1} parent=5 // pred_region
        // Predicated region
        $region29: #{tpu_custom_call.1} parent=27 // pred_check
          %p211 = pneg %p57
        $region30: #{tpu_custom_call.1} parent=27 // pred_check_branch
          %213 = sbr.rel (%p211) target = $region32
        $region31: #{tpu_custom_call.1} parent=27 // pred_region
          %s214 = sand.u32 %s47, 1
          %s215 = scalar_lea.sflag [#allocation3], %s214
          %s216 = sand.u32 %s47, 1
          %s217 = smul.addr %s216, 8
          %s218 = scalar_lea.vmem [#allocation2], %s217
          %220 = vsyncadd %s215, 0
          %s221 = sadd.s32 %s24, %s23
          %s222 = smul.addr %s221, 8
          %s223 = scalar_lea.hbm %s0, %s222
          %s225 = sshll.u32 %s223, 4
          %s226 = int_to_ptr.hbm [resolvable:$true] %s225
          %s227 = sshll.u32 %s218, 4
          %s228 = int_to_ptr.vmem [resolvable:$true] %s227
          %230 = dma.hbm_to_vmem [thread:$0]  %s226, 128, %s228, %s215
        $region32: #{tpu_custom_call.1} parent=27 // pred_fallthru
          _
      $region28: #{tpu_custom_call.1} parent=5 // pred_fallthru
        _
      %p231 = scmp.le.s32.totalorder 1, %s16
      %p232 = scmp.lt.s32.totalorder %s16, 3
      %p233 = pnand %p231, %p232
      %p234 = pneg %p233
      // Predicated region
      $region33: #{tpu_custom_call.1} parent=5 // pred_check
        _
      $region34: #{tpu_custom_call.1} parent=5 // pred_check_branch
        %236 = sbr.rel (%p233) target = $region36
      $region35: #{tpu_custom_call.1} parent=5 // pred_region
        %s237 = ssub.s32 %s16, 1
        %s238 = sand.u32 %s50, 1
        %s239 = scalar_lea.sflag [#allocation3], %s238
        %s240 = sand.u32 %s50, 1
        %s241 = smul.addr %s240, 8
        %s242 = scalar_lea.vmem [#allocation2], %s241
        // Predicated region
        $region37: #{tpu_custom_call.1} parent=35 // pred_check
          %p243 = pneg %p63
        $region38: #{tpu_custom_call.1} parent=35 // pred_check_branch
          %245 = sbr.rel (%p243) target = $region40
        $region39: #{tpu_custom_call.1} parent=35 // pred_region
          %247 = dma.done %s239, 128
        $region40: #{tpu_custom_call.1} parent=35 // pred_fallthru
          _
        %s248 = sand.u32 %s50, 1
        %s249 = scalar_lea.sflag [#allocation3], %s248
        %s250 = sand.u32 %s50, 1
        %s251 = smul.addr %s250, 8
        %s252 = scalar_lea.vmem [#allocation2], %s251
        %p253 = pneg %p63
        %p254 = pneg %p60
        %p255 = scmp.lt.s32.totalorder %s28, 0
        %s256 = scalar_select %p255, %s28, 0
        %s257 = smul.addr %s256, 2
        %s258 = scalar_lea.vmem %s1, %s257
        %p259 = pneg %p89
        %p260 = pneg %p86
        %p261 = scmp.lt.s32.totalorder %s28, 0
        %s262 = scalar_select %p261, %s28, 0
        %s263 = smul.addr %s262, 4
        %s264 = scalar_lea.vmem %s2, %s263
        %p265 = pneg %p115
        %p266 = pneg %p112
        %p267 = scmp.lt.s32.totalorder %s28, 0
        %s268 = scalar_select %p267, %s28, 0
        %s269 = smul.addr %s268, 4
        %s270 = scalar_lea.vmem %s3, %s269
        %p271 = pneg %p141
        %p272 = pneg %p138
        %p273 = pneg %p171
        %p274 = pneg %p168
        %s275 = sand.u32 %s158, 1
        %s276 = scalar_lea.sflag [#allocation4], %s275
        %s277 = sand.u32 %s158, 1
        %s278 = smul.addr %s277, 2
        %s279 = scalar_lea.vmem [#allocation5], %s278
        %p280 = scmp.lt.s32.totalorder %s28, 0
        %s281 = scalar_select %p280, %s28, 0
        %s282 = smul.addr %s281, 2
        %s283 = scalar_lea.vmem %s1, %s282
        %p284 = scmp.lt.s32.totalorder %s28, 0
        %s285 = scalar_select %p284, %s28, 0
        %s286 = smul.addr %s285, 4
        %s287 = scalar_lea.vmem %s2, %s286
        %p288 = scmp.lt.s32.totalorder %s28, 0
        %s289 = scalar_select %p288, %s28, 0
        %s290 = smul.addr %s289, 4
        %s291 = scalar_lea.vmem %s3, %s290
        %v293 = vld [vmem:[%s242] sm:$0xff]
        %v294 = vpack.c.bf16 %v293, %v293
        %v295 = vld [vmem:[%s283] sm:$0x3]
        %vm296 = vcmask 64512
        %v298 = vsel %vm296, %v295, 0
        %vm300 = vcmask 1043456
        %v302 = vsel %vm300, %v294, 0
        %304 = vmatpush.bf16.msra.mxu0 0
        %305 = vmatpush.bf16.msra.mxu0 0
        %306 = vmatpush.bf16.msra.mxu0 0
        %307 = vmatpush.bf16.msra.mxu0 0
        %308 = vmatpush.bf16.msra.mxu0 0
        %309 = vmatpush.bf16.msra.mxu0 0
        %310 = vmatpush.bf16.msra.mxu0 0
        %311 = vmatpush.bf16.msra.mxu0 %v302
        %312 = vmatmul.bf16.gmra.mxu0 %v298
        %v313 = vpop.f32.mrf.mxu0
        %v314 = vadd.f32 0.0, %v313
        %v315 = vpop.f32.mrf.mxu0
        %316 = vdwg.mxu0
        %v317 = vld [vmem:[%s287] sm:$0xf]
        %319 = vset.pattern.permute.xlu0 0
        %320 = vperm.xlu0 %319, %v317
        %v321 = vpop.permute.xlu0 %320
        %v323 = vmul.f32 %v314, %v321
        %v324 = vld [vmem:[%s291] sm:$0xf]
        %326 = vset.pattern.permute.xlu0 0
        %327 = vperm.xlu0 %326, %v324
        %v328 = vpop.permute.xlu0 %327
        %v330 = vadd.f32 %v323, %v328
        %v331 = vpack.c.bf16 %v330, %v330
        %vm332 = vcmask 517120
        %333 = vst.msk [vmem:[%s279] sm:$0x3] %vm332, %v331
        %s334 = sand.u32 %s158, 1
        %s335 = scalar_lea.sflag [#allocation4], %s334
        %s336 = sand.u32 %s158, 1
        %s337 = smul.addr %s336, 2
        %s338 = scalar_lea.vmem [#allocation5], %s337
        // Predicated region
        $region41: #{tpu_custom_call.1} parent=35 // pred_check
          %p339 = pneg %p168
        $region42: #{tpu_custom_call.1} parent=35 // pred_check_branch
          %341 = sbr.rel (%p339) target = $region44
        $region43: #{tpu_custom_call.1} parent=35 // pred_region
          %343 = vsyncadd %s335, 0
          %s344 = sadd.s32 %s27, %s28
          %s345 = sadd.s32 %s344, %s26
          %s346 = smul.addr %s345, 2
          %s347 = scalar_lea.hbm %s4, %s346
          %s349 = sshll.u32 %s338, 4
          %s350 = int_to_ptr.vmem [resolvable:$true] %s349
          %s351 = sshll.u32 %s347, 4
          %s352 = int_to_ptr.hbm [resolvable:$true] %s351
          %354 = dma.vmem_to_hbm [thread:$0]  %s350, 32, %s352, %s335
        $region44: #{tpu_custom_call.1} parent=35 // pred_fallthru
          _
      $region36: #{tpu_custom_call.1} parent=5 // pred_fallthru
        _
      %p355 = scmp.le.s32.totalorder 2, %s16
      // Predicated region
      $region45: #{tpu_custom_call.1} parent=5 // pred_check
        %p356 = pneg %p355
      $region46: #{tpu_custom_call.1} parent=5 // pred_check_branch
        %358 = sbr.rel (%p356) target = $region48
      $region47: #{tpu_custom_call.1} parent=5 // pred_region
        %s359 = ssub.s32 %s16, 2
        // Predicated region
        $region49: #{tpu_custom_call.1} parent=47 // pred_check
          %p360 = pneg %p174
        $region50: #{tpu_custom_call.1} parent=47 // pred_check_branch
          %362 = sbr.rel (%p360) target = $region52
        $region51: #{tpu_custom_call.1} parent=47 // pred_region
          %s363 = sand.u32 %s159, 1
          %s364 = scalar_lea.sflag [#allocation4], %s363
          %s365 = sand.u32 %s159, 1
          %s366 = smul.addr %s365, 2
          %s367 = scalar_lea.vmem [#allocation5], %s366
          %369 = dma.done %s364, 32
        $region52: #{tpu_custom_call.1} parent=47 // pred_fallthru
          _
      $region48: #{tpu_custom_call.1} parent=5 // pred_fallthru
        _
    $region6: #{tpu_custom_call.1} parent=1 // loop_footer
      %s20 = sadd.s32 1, %s16
    $region7: #{tpu_custom_call.1} parent=1 // loop_footer_branch
      %15 = sbr.rel target = $region3
    $region8: #{tpu_custom_call.1} parent=1 // loop_exit
      _
    %370 = vsyncpa [#allocation3], 1
    %s371 = scalar_lea.sflag [#allocation3], 1
    %372 = vsyncpa %s371, 1
    %373 = vsyncpa [#allocation4], 1
    %s374 = scalar_lea.sflag [#allocation4], 1
    %375 = vsyncpa %s374, 1

</llo_original>
